<compile_context>
chip_gen: v5e
topology: v5e:2x2
jax: 0.10.0
libtpu: 0.0.40
codegen_flags: <defaults>
</compile_context>

<pallas_src>
import functools

import jax
import jax.numpy as jnp
from jax.experimental import pallas as pl
from jax.experimental.pallas import tpu as pltpu


def _round_up(x, m):
    return -(-x // m) * m


def _convautoenc_kernel(main_ref, halo_ref, w1_ref, b1_ref, w2_ref, b2_ref,
                        out_ref, win_ref, *, TF, TZ, S, r, Hb, L_out):
    t = pl.program_id(1)

    # ---- assemble this tile's input window (TF body frames + Hb halo frames)
    # in VMEM scratch; both pieces come from the same un-duplicated HBM array.
    win_ref[pl.ds(0, TF), :] = main_ref[...]
    win_ref[pl.ds(TF, Hb), :] = halo_ref[...]

    # ---- encoder: Conv1d(1 -> C, stride S, pad K//2) as r shifted sub-matmuls.
    # Local conv row q corresponds to global conv row l = t*TF + q - (r-1);
    # it consumes local window frames [q, q+r).
    acc_y = jnp.dot(win_ref[pl.ds(0, TZ), :], w1_ref[pl.ds(0, S), :],
                    preferred_element_type=jnp.float32)
    for j in range(1, r):                                  # static unroll, r = K // S
        acc_y = acc_y + jnp.dot(win_ref[pl.ds(j, TZ), :],
                                w1_ref[pl.ds(j * S, S), :],
                                preferred_element_type=jnp.float32)
    y = jnp.tanh(acc_y + b1_ref[...])                      # (TZ, C) f32

    # Halo / padding rows (global conv row outside [0, L_out)) must contribute
    # nothing to the overlap-add (bias makes them nonzero otherwise) -> mask.
    row = jax.lax.broadcasted_iota(jnp.int32, (TZ, 1), 0)
    l_idx = t * TF + row - (r - 1)
    y = jnp.where((l_idx >= 0) & (l_idx < L_out), y, 0.0)
    y = y.astype(w2_ref.dtype)

    # ---- decoder: ConvTranspose1d(C -> 1, stride S, pad K//2); overlap-add is
    # folded into MXU accumulation:
    #   out frame m = sum_j y[m + (r-1-j), :] @ W2[:, j*S:(j+1)*S]  + b2
    acc = jnp.dot(y[r - 1:r - 1 + TF, :], w2_ref[:, pl.ds(0, S)],
                  preferred_element_type=jnp.float32)
    for j in range(1, r):
        q0 = r - 1 - j
        acc = acc + jnp.dot(y[q0:q0 + TF, :], w2_ref[:, pl.ds(j * S, S)],
                            preferred_element_type=jnp.float32)
    out_ref[...] = acc + b2_ref[0]


def convautoenc_forward(x, w1, b1, w2, b2, *, kernel_size, stride,
                        frame_tile=512, compute_dtype=jnp.float32):
    """x: (B, 1, L) f32. w1, w2: (C, 1, K). b1: (C,). b2: (1,). Returns (B, 1, L_rec)."""
    B, c_in, L = x.shape
    assert c_in == 1
    K, S = kernel_size, stride
    P = K // 2
    assert K % S == 0, "kernel assumes kernel_size % stride == 0 (true for defaults 2048/512)"
    r = K // S
    C = w1.shape[0]
    L_out = (L + 2 * P - K) // S + 1                 # PyTorch Conv1d output length
    L_rec = (L_out - 1) * S - 2 * P + K              # PyTorch ConvTranspose1d output length
    n_frames = L_out + r - 1                         # S-frames spanning the full OA support

    H = 2 * (r - 1)                                  # halo frames needed per tile
    Hb = max(8, _round_up(H, 8))                     # halo block (sublane-aligned)
    TF = max(Hb, min(frame_tile, _round_up(n_frames, Hb)))
    TF = _round_up(TF, Hb)                           # Hb | TF -> exact halo block index
    TZ = TF + r - 1                                  # conv rows computed per tile (incl. halo)
    T = pl.cdiv(n_frames, TF)                        # frame tiles
    NFP = (T + 1) * TF                               # padded frame count (covers body + halo blocks)

    # --- glue: padded signal -> non-overlapping S-frames (single, un-duplicated array)
    xp = jnp.pad(x[:, 0, :].astype(jnp.float32), ((0, 0), (P, P)))
    frames = xp[:, :n_frames * S].reshape(B, n_frames, S)
    pad_front = r - 1
    pad_back = NFP - pad_front - n_frames
    frames_p = jnp.pad(frames, ((0, 0), (pad_front, pad_back), (0, 0))).astype(compute_dtype)

    w1_kc = jnp.transpose(w1[:, 0, :], (1, 0)).astype(compute_dtype)   # (K, C)
    b1_row = b1[None, :].astype(jnp.float32)                           # (1, C)
    w2_ck = w2[:, 0, :].astype(compute_dtype)                          # (C, K)
    b2_f32 = b2.astype(jnp.float32)                                    # (1,)

    kernel = functools.partial(_convautoenc_kernel,
                               TF=TF, TZ=TZ, S=S, r=r, Hb=Hb, L_out=L_out)

    frames_out = pl.pallas_call(
        kernel,
        out_shape=jax.ShapeDtypeStruct((B, T, TF, S), jnp.float32),
        grid_spec=pltpu.PrefetchScalarGridSpec(
            num_scalar_prefetch=0,
            grid=(B, T),
            in_specs=[
                # body frames of tile t: frames_p[b, t*TF : (t+1)*TF]
                pl.BlockSpec((None, TF, S), lambda b, t: (b, t, 0)),
                # halo frames: frames_p[b, (t+1)*TF : (t+1)*TF + Hb]
                pl.BlockSpec((None, Hb, S), lambda b, t: (b, (t + 1) * (TF // Hb), 0)),
                pl.BlockSpec((K, C), lambda b, t: (0, 0)),              # W1 (VMEM-resident)
                pl.BlockSpec((1, C), lambda b, t: (0, 0)),              # b1
                pl.BlockSpec((C, K), lambda b, t: (0, 0)),              # W2 (VMEM-resident)
                pl.BlockSpec(memory_space=pltpu.MemorySpace.SMEM),      # b2 scalar
            ],
            out_specs=pl.BlockSpec((None, None, TF, S), lambda b, t: (b, t, 0, 0)),
            scratch_shapes=[pltpu.VMEM((TF + Hb, S), compute_dtype)],
        ),
        compiler_params=pltpu.CompilerParams(
            dimension_semantics=("parallel", "parallel")),
    )(frames_p, frames_p, w1_kc, b1_row, w2_ck, b2_f32)

    out_full = frames_out.reshape(B, T * TF * S)      # full transposed-conv support (padded)
    xrek = out_full[:, P:P + L_rec]                   # crop ConvTranspose padding
    return xrek[:, None, :]                           # (B, 1, L_rec)


def reference_forward(x, w1, b1, w2, b2, *, kernel_size, stride):
    """Pure-JAX reference matching PyTorch Conv1d / ConvTranspose1d semantics."""
    B, _, L = x.shape
    K, S = kernel_size, stride
    P = K // 2
    L_out = (L + 2 * P - K) // S + 1
    L_rec = (L_out - 1) * S - 2 * P + K
    xp = jnp.pad(x[:, 0, :], ((0, 0), (P, P)))
    idx = jnp.arange(L_out)[:, None] * S + jnp.arange(K)[None, :]
    patches = xp[:, idx]                                              # (B, L_out, K)
    y = jnp.tanh(jnp.einsum('blk,ck->blc', patches, w1[:, 0, :]) + b1[None, None, :])
    z = jnp.einsum('blc,ck->blk', y, w2[:, 0, :])                     # (B, L_out, K)
    out_full = jnp.zeros((B, (L_out - 1) * S + K), jnp.float32)
    for l in range(L_out):
        out_full = out_full.at[:, l * S:l * S + K].add(z[:, l, :])
    return (out_full[:, P:P + L_rec] + b2[0])[:, None, :]


if __name__ == "__main__":
    # Small analog of Convautoenc(out_channels=32, kernel_size=2048, stride=512)
    out_channels, kernel_size, stride = 8, 16, 4
    B, L = 2, 64

    key = jax.random.PRNGKey(0)
    k1, k2, k3, k4, k5 = jax.random.split(key, 5)
    x = jax.random.normal(k1, (B, 1, L), jnp.float32)
    # conv1:    weight (C_out, 1, K), bias (C_out,)
    w1 = jax.random.normal(k2, (out_channels, 1, kernel_size), jnp.float32) * 0.05
    b1 = jax.random.normal(k3, (out_channels,), jnp.float32) * 0.05
    # synconv1: weight (C_in, 1, K), bias (1,)
    w2 = jax.random.normal(k4, (out_channels, 1, kernel_size), jnp.float32) * 0.05
    b2 = jax.random.normal(k5, (1,), jnp.float32) * 0.05

    ref = reference_forward(x, w1, b1, w2, b2, kernel_size=kernel_size, stride=stride)

    # f32 path; small frame_tile so the multi-tile grid / halo / masking is exercised.
    out = convautoenc_forward(x, w1, b1, w2, b2, kernel_size=kernel_size,
                              stride=stride, frame_tile=8,
                              compute_dtype=jnp.float32)
    out = jax.block_until_ready(out)
    assert out.shape == (B, 1, L), out.shape
    max_err = float(jnp.max(jnp.abs(out - ref)))
    assert jnp.allclose(out, ref, atol=1e-4, rtol=1e-4), max_err

    # bf16 matmul path (f32 accumulation) -- looser tolerance for bf16 rounding.
    out_bf = convautoenc_forward(x, w1, b1, w2, b2, kernel_size=kernel_size,
                                 stride=stride, frame_tile=8,
                                 compute_dtype=jnp.bfloat16)
    out_bf = jax.block_until_ready(out_bf)
    max_err_bf = float(jnp.max(jnp.abs(out_bf - ref)))
    assert jnp.allclose(out_bf, ref, atol=3e-2, rtol=3e-2), max_err_bf

    # Different length / different tiling (single wider tile) to exercise the
    # non-divisible last tile and the halo-block indexing.
    L2 = 60
    x2 = jax.random.normal(jax.random.PRNGKey(7), (B, 1, L2), jnp.float32)
    ref2 = reference_forward(x2, w1, b1, w2, b2, kernel_size=kernel_size, stride=stride)
    out2 = convautoenc_forward(x2, w1, b1, w2, b2, kernel_size=kernel_size,
                               stride=stride, frame_tile=16,
                               compute_dtype=jnp.float32)
    out2 = jax.block_until_ready(out2)
    assert out2.shape == ref2.shape, (out2.shape, ref2.shape)
    max_err2 = float(jnp.max(jnp.abs(out2 - ref2)))
    assert jnp.allclose(out2, ref2, atol=1e-4, rtol=1e-4), max_err2

    print("KERNEL_OK")
</pallas_src>

<mosaic_0001>
module attributes {stable_mosaic.version = 11 : i64} {
  func.func @_convautoenc_kernel(%arg0: i32, %arg1: i32, %arg2: memref<1x8x4xf32, #tpu.memory_space<vmem>>, %arg3: memref<1x8x4xf32, #tpu.memory_space<vmem>>, %arg4: memref<16x8xf32, #tpu.memory_space<vmem>>, %arg5: memref<1x8xf32, #tpu.memory_space<vmem>>, %arg6: memref<8x16xf32, #tpu.memory_space<vmem>>, %arg7: memref<1xf32, #tpu.memory_space<smem>>, %arg8: memref<1x1x8x4xf32, #tpu.memory_space<vmem>>, %arg9: memref<16x4xf32, #tpu.memory_space<vmem>>) attributes {dimension_semantics = [#tpu.dimension_semantics<parallel>, #tpu.dimension_semantics<parallel>], iteration_bounds = array<i64: 2, 3>, scalar_prefetch = 0 : i64, scratch_operands = 1 : i64, tpu.core_type = #tpu.core_type<tc>, window_params = [{transform_indices = @transform_0, window_bounds = array<i64: 1, 8, 4>}, {transform_indices = @transform_1, window_bounds = array<i64: 1, 8, 4>}, {pipeline_mode = #tpu.pipeline_mode<synchronous>, transform_indices = @transform_2, window_bounds = array<i64: 16, 8>}, {pipeline_mode = #tpu.pipeline_mode<synchronous>, transform_indices = @transform_3, window_bounds = array<i64: 1, 8>}, {pipeline_mode = #tpu.pipeline_mode<synchronous>, transform_indices = @transform_4, window_bounds = array<i64: 8, 16>}, {transform_indices = @transform_5, window_bounds = array<i64: 1>}, {transform_indices = @transform_6, window_bounds = array<i64: 1, 1, 8, 4>}]} {
    %c0 = arith.constant 0 : index
    %c0_0 = arith.constant 0 : index
    %c0_1 = arith.constant 0 : index
    %0 = vector.load %arg2[%c0, %c0_0, %c0_1] : memref<1x8x4xf32, #tpu.memory_space<vmem>>, vector<1x8x4xf32>
    %1 = vector.shape_cast %0 : vector<1x8x4xf32> to vector<8x4xf32>
    %c0_2 = arith.constant 0 : index
    %c0_3 = arith.constant 0 : index
    %2 = vector.load %arg9[%c0_2, %c0_3] : memref<16x4xf32, #tpu.memory_space<vmem>>, vector<8x4xf32>
    tpu.vector_store %arg9[%c0_2, %c0_3], %1 {strides = array<i32>} : memref<16x4xf32, #tpu.memory_space<vmem>>, vector<8x4xf32>,
    %c0_4 = arith.constant 0 : index
    %c0_5 = arith.constant 0 : index
    %c0_6 = arith.constant 0 : index
    %3 = vector.load %arg3[%c0_4, %c0_5, %c0_6] : memref<1x8x4xf32, #tpu.memory_space<vmem>>, vector<1x8x4xf32>
    %4 = vector.shape_cast %3 : vector<1x8x4xf32> to vector<8x4xf32>
    %c8 = arith.constant 8 : index
    %c0_7 = arith.constant 0 : index
    %5 = vector.load %arg9[%c8, %c0_7] : memref<16x4xf32, #tpu.memory_space<vmem>>, vector<8x4xf32>
    tpu.vector_store %arg9[%c8, %c0_7], %4 {strides = array<i32>} : memref<16x4xf32, #tpu.memory_space<vmem>>, vector<8x4xf32>,
    %c0_8 = arith.constant 0 : index
    %c0_9 = arith.constant 0 : index
    %6 = vector.load %arg9[%c0_8, %c0_9] : memref<16x4xf32, #tpu.memory_space<vmem>>, vector<11x4xf32>
    %c0_10 = arith.constant 0 : index
    %c0_11 = arith.constant 0 : index
    %7 = vector.load %arg4[%c0_10, %c0_11] : memref<16x8xf32, #tpu.memory_space<vmem>>, vector<4x8xf32>
    %cst = arith.constant dense<0.000000e+00> : vector<11x8xf32>
    %8 = tpu.matmul %6, %7, %cst {dimension_numbers = #tpu.dot_dimension_numbers<[1], [0], [0], [1], [0, 0, 1, 1], [], []>} : vector<11x4xf32>, vector<4x8xf32>, vector<11x8xf32> -> vector<11x8xf32>
    %c1 = arith.constant 1 : index
    %c0_12 = arith.constant 0 : index
    %9 = vector.load %arg9[%c1, %c0_12] : memref<16x4xf32, #tpu.memory_space<vmem>>, vector<11x4xf32>
    %c4 = arith.constant 4 : index
    %c0_13 = arith.constant 0 : index
    %10 = vector.load %arg4[%c4, %c0_13] : memref<16x8xf32, #tpu.memory_space<vmem>>, vector<4x8xf32>
    %cst_14 = arith.constant dense<0.000000e+00> : vector<11x8xf32>
    %11 = tpu.matmul %9, %10, %cst_14 {dimension_numbers = #tpu.dot_dimension_numbers<[1], [0], [0], [1], [0, 0, 1, 1], [], []>} : vector<11x4xf32>, vector<4x8xf32>, vector<11x8xf32> -> vector<11x8xf32>
    %12 = arith.addf %8, %11 : vector<11x8xf32>
    %c2 = arith.constant 2 : index
    %c0_15 = arith.constant 0 : index
    %13 = vector.load %arg9[%c2, %c0_15] : memref<16x4xf32, #tpu.memory_space<vmem>>, vector<11x4xf32>
    %c8_16 = arith.constant 8 : index
    %c0_17 = arith.constant 0 : index
    %14 = vector.load %arg4[%c8_16, %c0_17] : memref<16x8xf32, #tpu.memory_space<vmem>>, vector<4x8xf32>
    %cst_18 = arith.constant dense<0.000000e+00> : vector<11x8xf32>
    %15 = tpu.matmul %13, %14, %cst_18 {dimension_numbers = #tpu.dot_dimension_numbers<[1], [0], [0], [1], [0, 0, 1, 1], [], []>} : vector<11x4xf32>, vector<4x8xf32>, vector<11x8xf32> -> vector<11x8xf32>
    %16 = arith.addf %12, %15 : vector<11x8xf32>
    %c3 = arith.constant 3 : index
    %c0_19 = arith.constant 0 : index
    %17 = vector.load %arg9[%c3, %c0_19] : memref<16x4xf32, #tpu.memory_space<vmem>>, vector<11x4xf32>
    %c12 = arith.constant 12 : index
    %c0_20 = arith.constant 0 : index
    %18 = vector.load %arg4[%c12, %c0_20] : memref<16x8xf32, #tpu.memory_space<vmem>>, vector<4x8xf32>
    %cst_21 = arith.constant dense<0.000000e+00> : vector<11x8xf32>
    %19 = tpu.matmul %17, %18, %cst_21 {dimension_numbers = #tpu.dot_dimension_numbers<[1], [0], [0], [1], [0, 0, 1, 1], [], []>} : vector<11x4xf32>, vector<4x8xf32>, vector<11x8xf32> -> vector<11x8xf32>
    %20 = arith.addf %16, %19 : vector<11x8xf32>
    %c0_22 = arith.constant 0 : index
    %c0_23 = arith.constant 0 : index
    %21 = vector.load %arg5[%c0_22, %c0_23] : memref<1x8xf32, #tpu.memory_space<vmem>>, vector<1x8xf32>
    %22 = vector.broadcast %21 : vector<1x8xf32> to vector<11x8xf32>
    %23 = arith.addf %20, %22 : vector<11x8xf32>
    %24 = math.tanh %23 : vector<11x8xf32>
    %25 = tpu.iota {dimensions = array<i32: 0>} : vector<11x1xi32>
    %c8_i32 = arith.constant 8 : i32
    %26 = arith.muli %arg1, %c8_i32 : i32
    %27 = vector.broadcast %26 : i32 to vector<11x1xi32>
    %28 = arith.addi %27, %25 : vector<11x1xi32>
    %c3_i32 = arith.constant 3 : i32
    %29 = vector.broadcast %c3_i32 : i32 to vector<11x1xi32>
    %30 = arith.subi %28, %29 : vector<11x1xi32>
    %c0_i32 = arith.constant 0 : i32
    %31 = vector.broadcast %c0_i32 : i32 to vector<11x1xi32>
    %32 = arith.cmpi sge, %30, %31 : vector<11x1xi32>
    %c17_i32 = arith.constant 17 : i32
    %33 = vector.broadcast %c17_i32 : i32 to vector<11x1xi32>
    %34 = arith.cmpi slt, %30, %33 : vector<11x1xi32>
    %35 = arith.andi %32, %34 : vector<11x1xi1>
    %cst_24 = arith.constant 0.000000e+00 : f32
    %36 = vector.shape_cast %35 : vector<11x1xi1> to vector<11x1xi1>
    %37 = vector.broadcast %36 : vector<11x1xi1> to vector<11x8xi1>
    %38 = vector.broadcast %cst_24 : f32 to vector<11x8xf32>
    %39 = arith.select %37, %24, %38 : vector<11x8xi1>, vector<11x8xf32>
    %40 = vector.extract_strided_slice %39 {offsets = [3, 0], sizes = [8, 8], strides = [1, 1]} : vector<11x8xf32> to vector<8x8xf32>
    %c0_25 = arith.constant 0 : index
    %c0_26 = arith.constant 0 : index
    %41 = vector.load %arg6[%c0_25, %c0_26] : memref<8x16xf32, #tpu.memory_space<vmem>>, vector<8x4xf32>
    %cst_27 = arith.constant dense<0.000000e+00> : vector<8x4xf32>
    %42 = tpu.matmul %40, %41, %cst_27 {dimension_numbers = #tpu.dot_dimension_numbers<[1], [0], [0], [1], [0, 0, 1, 1], [], []>} : vector<8x8xf32>, vector<8x4xf32>, vector<8x4xf32> -> vector<8x4xf32>
    %43 = vector.extract_strided_slice %39 {offsets = [2, 0], sizes = [8, 8], strides = [1, 1]} : vector<11x8xf32> to vector<8x8xf32>
    %c0_28 = arith.constant 0 : index
    %c4_29 = arith.constant 4 : index
    %44 = vector.load %arg6[%c0_28, %c4_29] : memref<8x16xf32, #tpu.memory_space<vmem>>, vector<8x4xf32>
    %cst_30 = arith.constant dense<0.000000e+00> : vector<8x4xf32>
    %45 = tpu.matmul %43, %44, %cst_30 {dimension_numbers = #tpu.dot_dimension_numbers<[1], [0], [0], [1], [0, 0, 1, 1], [], []>} : vector<8x8xf32>, vector<8x4xf32>, vector<8x4xf32> -> vector<8x4xf32>
    %46 = arith.addf %42, %45 : vector<8x4xf32>
    %47 = vector.extract_strided_slice %39 {offsets = [1, 0], sizes = [8, 8], strides = [1, 1]} : vector<11x8xf32> to vector<8x8xf32>
    %c0_31 = arith.constant 0 : index
    %c8_32 = arith.constant 8 : index
    %48 = vector.load %arg6[%c0_31, %c8_32] : memref<8x16xf32, #tpu.memory_space<vmem>>, vector<8x4xf32>
    %cst_33 = arith.constant dense<0.000000e+00> : vector<8x4xf32>
    %49 = tpu.matmul %47, %48, %cst_33 {dimension_numbers = #tpu.dot_dimension_numbers<[1], [0], [0], [1], [0, 0, 1, 1], [], []>} : vector<8x8xf32>, vector<8x4xf32>, vector<8x4xf32> -> vector<8x4xf32>
    %50 = arith.addf %46, %49 : vector<8x4xf32>
    %51 = vector.extract_strided_slice %39 {offsets = [0, 0], sizes = [8, 8], strides = [1, 1]} : vector<11x8xf32> to vector<8x8xf32>
    %c0_34 = arith.constant 0 : index
    %c12_35 = arith.constant 12 : index
    %52 = vector.load %arg6[%c0_34, %c12_35] : memref<8x16xf32, #tpu.memory_space<vmem>>, vector<8x4xf32>
    %cst_36 = arith.constant dense<0.000000e+00> : vector<8x4xf32>
    %53 = tpu.matmul %51, %52, %cst_36 {dimension_numbers = #tpu.dot_dimension_numbers<[1], [0], [0], [1], [0, 0, 1, 1], [], []>} : vector<8x8xf32>, vector<8x4xf32>, vector<8x4xf32> -> vector<8x4xf32>
    %54 = arith.addf %50, %53 : vector<8x4xf32>
    %c0_37 = arith.constant 0 : index
    %55 = memref.load %arg7[%c0_37] : memref<1xf32, #tpu.memory_space<smem>>
    %56 = vector.broadcast %55 : f32 to vector<8x4xf32>
    %57 = arith.addf %54, %56 : vector<8x4xf32>
    %c0_38 = arith.constant 0 : index
    %c0_39 = arith.constant 0 : index
    %c0_40 = arith.constant 0 : index
    %c0_41 = arith.constant 0 : index
    %58 = vector.load %arg8[%c0_38, %c0_39, %c0_40, %c0_41] : memref<1x1x8x4xf32, #tpu.memory_space<vmem>>, vector<1x1x8x4xf32>
    %59 = vector.shape_cast %58 : vector<1x1x8x4xf32> to vector<8x4xf32>
    %60 = vector.shape_cast %57 : vector<8x4xf32> to vector<1x1x8x4xf32>
    tpu.vector_store %arg8[%c0_38, %c0_39, %c0_40, %c0_41], %60 {strides = array<i32>} : memref<1x1x8x4xf32, #tpu.memory_space<vmem>>, vector<1x1x8x4xf32>,
    return
  }
  func.func @transform_0(%arg0: i32, %arg1: i32) -> (i32, i32, i32) {
    %c0_i32 = arith.constant 0 : i32
    %c0_i32_0 = arith.constant 0 : i32
    return %arg0, %arg1, %c0_i32 : i32, i32, i32
  }
  func.func @transform_1(%arg0: i32, %arg1: i32) -> (i32, i32, i32) {
    %c1_i32 = arith.constant 1 : i32
    %0 = arith.addi %arg1, %c1_i32 : i32
    %c1_i32_0 = arith.constant 1 : i32
    %1 = arith.muli %0, %c1_i32_0 : i32
    %c0_i32 = arith.constant 0 : i32
    %c0_i32_1 = arith.constant 0 : i32
    return %arg0, %1, %c0_i32 : i32, i32, i32
  }
  func.func @transform_2(%arg0: i32, %arg1: i32) -> (i32, i32) {
    %c0_i32 = arith.constant 0 : i32
    %c0_i32_0 = arith.constant 0 : i32
    %c0_i32_1 = arith.constant 0 : i32
    return %c0_i32, %c0_i32_0 : i32, i32
  }
  func.func @transform_3(%arg0: i32, %arg1: i32) -> (i32, i32) {
    %c0_i32 = arith.constant 0 : i32
    %c0_i32_0 = arith.constant 0 : i32
    %c0_i32_1 = arith.constant 0 : i32
    return %c0_i32, %c0_i32_0 : i32, i32
  }
  func.func @transform_4(%arg0: i32, %arg1: i32) -> (i32, i32) {
    %c0_i32 = arith.constant 0 : i32
    %c0_i32_0 = arith.constant 0 : i32
    %c0_i32_1 = arith.constant 0 : i32
    return %c0_i32, %c0_i32_0 : i32, i32
  }
  func.func @transform_5(%arg0: i32, %arg1: i32) -> i32 {
    %c0_i32 = arith.constant 0 : i32
    %c0_i32_0 = arith.constant 0 : i32
    return %c0_i32 : i32
  }
  func.func @transform_6(%arg0: i32, %arg1: i32) -> (i32, i32, i32, i32) {
    %c0_i32 = arith.constant 0 : i32
    %c0_i32_0 = arith.constant 0 : i32
    %c0_i32_1 = arith.constant 0 : i32
    return %arg0, %arg1, %c0_i32, %c0_i32_0 : i32, i32, i32, i32
  }
}

</mosaic_0001>

<llo_original>
// kernel: tpu_custom_call.1
$region0: #{tpu_custom_call.1}
  #allocation0 [shape = 'u32[]', space=smem, size = 0x4, offset = 0x4, fixed_abs, tag = 'smem constant byte address 0x4 - core index']
  #allocation1 [shape = 'u32[72,128]{1,0:T(1,128)}', space=vmem, size = 0x9000, scoped, tag = 'internal scratch']
  #allocation2 [shape = 'f32[16,4]{1,0:T(8,128)}', space=vmem, size = 0x2000, scoped, tag = 'scratch operand']
  #allocation3 [shape = 'f32[1]{0:T(128)S(6)}', space=smem, size = 0x200, scoped, tag = 'scoped memory for tpu_custom_call.1']
  %s0 = inlined_call_operand.vmem [shape: f32[2,32,4], index: 0, kind: input, shape index: {}]
  %s1 = inlined_call_operand.vmem [shape: f32[2,32,4], index: 1, kind: input, shape index: {}]
  %s2 = inlined_call_operand.vmem [shape: f32[16,8], index: 2, kind: input, shape index: {}]
  %s3 = inlined_call_operand.vmem [shape: f32[1,8], index: 3, kind: input, shape index: {}]
  %s4 = inlined_call_operand.vmem [shape: f32[8,16], index: 4, kind: input, shape index: {}]
  %s5 = inlined_call_operand.<no memory space> [shape: f32[1], index: 5, kind: input, shape index: {}]
  %s6 = inlined_call_operand.vmem [shape: f32[2,3,8,4], index: 6, kind: output, shape index: {}]
  %s7 = sld [smem:[#allocation0]]
  $region57: #{tpu_custom_call.1} parent=0
    _
  %s9 = ssub.s32 1, %s7
  %s10 = scalar_select 0, %s9, %s7
  %11 = sst [smem:[#allocation3]] %s5
  loop: start=0, step=1, limit=8
  $region2: #{tpu_custom_call.1} parent=0 // loop_pre_header
    _
  $region3: #{tpu_custom_call.1} parent=0 // loop_header
    %s13 = sphi 0, %s17
    %p14 = scmp.ge.s32.totalorder %s13, 8
    %s20 = sphi 0, %s32
    %s21 = sphi 0, %s28
    %s22 = sphi 0, %s20
    %s23 = sphi 0, %s21
    %s24 = sphi 0, %s22
    %s25 = sphi 0, %s23
    %s37 = sphi 0, %s39
    %s40 = sphi 0, %s37
    %s41 = sphi 0, %s40
    %s57 = sphi 0, %s41
    %s67 = sphi 0, %s69
    %s70 = sphi 0, %s67
    %s71 = sphi 0, %s70
    %s87 = sphi 0, %s71
    %s91 = sphi 0, %s91
    %s93 = sphi 0, %s91
    %s94 = sphi 0, %s93
    %s108 = sphi 0, %s94
    %s112 = sphi 0, %s112
    %s114 = sphi 0, %s112
    %s115 = sphi 0, %s114
    %s129 = sphi 0, %s115
    %s133 = sphi 0, %s133
    %s135 = sphi 0, %s133
    %s136 = sphi 0, %s135
    %s150 = sphi 0, %s136
    %s154 = sphi 0, %s154
    %s156 = sphi 0, %s154
    %s157 = sphi 0, %s156
    %s171 = sphi 0, %s157
    %s179 = sphi 0, %s181
    %s182 = sphi 0, %s179
    %s183 = sphi 0, %s182
    %s199 = sphi 0, %s183
  $region4: #{tpu_custom_call.1} parent=0 // loop_header_branch
    %16 = sbr.rel (%p14) target = $region8
  $region5: #{tpu_custom_call.1} parent=0 // loop_body
    %s18 = ssub.s32 %s13, 1
    %s19 = ssub.s32 %s13, 2
    %s26 = sadd.s32 1, %s21
    %p27 = scmp.ge.s32.totalorder %s26, 3
    %s28 = scalar_select %p27, 0, %s26
    %s29 = sadd.s32 1, %s20
    %s30 = scalar_select %p27, %s29, %s20
    %p31 = scmp.ge.s32.totalorder %s30, 2
    %s32 = scalar_select %p31, 0, %s30
    %s33 = ssub.s32 %s20, %s32
    %s34 = ssub.s32 %s21, %s28
    %s35 = sor.u32 %s33, %s34
    %p36 = scmp.eq.s32.totalorder %s35, 0
    %s38 = sadd.s32 %s37, 1
    %s39 = scalar_select %p36, %s37, %s38
    %p42 = pneg %p36
    %p43 = scmp.eq.s32.totalorder %s13, 5
    %p44 = por %p42, %p43
    %p45 = scmp.ne.s32.totalorder %s37, %s40
    %p46 = scmp.eq.s32.totalorder %s13, 0
    %p47 = por %p45, %p46
    %p48 = scmp.ne.s32.totalorder %s37, %s40
    %p49 = scmp.eq.s32.totalorder %s18, 5
    %p50 = por %p48, %p49
    %p51 = scmp.ne.s32.totalorder %s40, %s41
    %p52 = scmp.eq.s32.totalorder %s18, 0
    %p53 = por %p51, %p52
    %p54 = scmp.ne.s32.totalorder %s40, %s41
    %p55 = scmp.eq.s32.totalorder %s19, 5
    %p56 = por %p54, %p55
    %p58 = scmp.ne.s32.totalorder %s41, %s57
    %p59 = scmp.eq.s32.totalorder %s19, 0
    %p60 = por %p58, %p59
    %s61 = sadd.s32 %s21, 1
    %s62 = sadd.s32 %s28, 1
    %s63 = ssub.s32 %s20, %s32
    %s64 = ssub.s32 %s61, %s62
    %s65 = sor.u32 %s63, %s64
    %p66 = scmp.eq.s32.totalorder %s65, 0
    %s68 = sadd.s32 %s67, 1
    %s69 = scalar_select %p66, %s67, %s68
    %p72 = pneg %p66
    %p73 = scmp.eq.s32.totalorder %s13, 5
    %p74 = por %p72, %p73
    %p75 = scmp.ne.s32.totalorder %s67, %s70
    %p76 = scmp.eq.s32.totalorder %s13, 0
    %p77 = por %p75, %p76
    %p78 = scmp.ne.s32.totalorder %s67, %s70
    %p79 = scmp.eq.s32.totalorder %s18, 5
    %p80 = por %p78, %p79
    %p81 = scmp.ne.s32.totalorder %s70, %s71
    %p82 = scmp.eq.s32.totalorder %s18, 0
    %p83 = por %p81, %p82
    %p84 = scmp.ne.s32.totalorder %s70, %s71
    %p85 = scmp.eq.s32.totalorder %s19, 5
    %p86 = por %p84, %p85
    %p88 = scmp.ne.s32.totalorder %s71, %s87
    %p89 = scmp.eq.s32.totalorder %s19, 0
    %p90 = por %p88, %p89
    %s92 = sadd.s32 %s91, 1
    %p95 = scmp.eq.s32.totalorder %s13, 5
    %p96 = scmp.ne.s32.totalorder %s91, %s93
    %p97 = scmp.eq.s32.totalorder %s13, 0
    %p98 = por %p96, %p97
    %p99 = scmp.ne.s32.totalorder %s91, %s93
    %p100 = scmp.eq.s32.totalorder %s18, 5
    %p101 = por %p99, %p100
    %p102 = scmp.ne.s32.totalorder %s93, %s94
    %p103 = scmp.eq.s32.totalorder %s18, 0
    %p104 = por %p102, %p103
    %p105 = scmp.ne.s32.totalorder %s93, %s94
    %p106 = scmp.eq.s32.totalorder %s19, 5
    %p107 = por %p105, %p106
    %p109 = scmp.ne.s32.totalorder %s94, %s108
    %p110 = scmp.eq.s32.totalorder %s19, 0
    %p111 = por %p109, %p110
    %s113 = sadd.s32 %s112, 1
    %p116 = scmp.eq.s32.totalorder %s13, 5
    %p117 = scmp.ne.s32.totalorder %s112, %s114
    %p118 = scmp.eq.s32.totalorder %s13, 0
    %p119 = por %p117, %p118
    %p120 = scmp.ne.s32.totalorder %s112, %s114
    %p121 = scmp.eq.s32.totalorder %s18, 5
    %p122 = por %p120, %p121
    %p123 = scmp.ne.s32.totalorder %s114, %s115
    %p124 = scmp.eq.s32.totalorder %s18, 0
    %p125 = por %p123, %p124
    %p126 = scmp.ne.s32.totalorder %s114, %s115
    %p127 = scmp.eq.s32.totalorder %s19, 5
    %p128 = por %p126, %p127
    %p130 = scmp.ne.s32.totalorder %s115, %s129
    %p131 = scmp.eq.s32.totalorder %s19, 0
    %p132 = por %p130, %p131
    %s134 = sadd.s32 %s133, 1
    %p137 = scmp.eq.s32.totalorder %s13, 5
    %p138 = scmp.ne.s32.totalorder %s133, %s135
    %p139 = scmp.eq.s32.totalorder %s13, 0
    %p140 = por %p138, %p139
    %p141 = scmp.ne.s32.totalorder %s133, %s135
    %p142 = scmp.eq.s32.totalorder %s18, 5
    %p143 = por %p141, %p142
    %p144 = scmp.ne.s32.totalorder %s135, %s136
    %p145 = scmp.eq.s32.totalorder %s18, 0
    %p146 = por %p144, %p145
    %p147 = scmp.ne.s32.totalorder %s135, %s136
    %p148 = scmp.eq.s32.totalorder %s19, 5
    %p149 = por %p147, %p148
    %p151 = scmp.ne.s32.totalorder %s136, %s150
    %p152 = scmp.eq.s32.totalorder %s19, 0
    %p153 = por %p151, %p152
    %s155 = sadd.s32 %s154, 1
    %p158 = scmp.eq.s32.totalorder %s13, 5
    %p159 = scmp.ne.s32.totalorder %s154, %s156
    %p160 = scmp.eq.s32.totalorder %s13, 0
    %p161 = por %p159, %p160
    %p162 = scmp.ne.s32.totalorder %s154, %s156
    %p163 = scmp.eq.s32.totalorder %s18, 5
    %p164 = por %p162, %p163
    %p165 = scmp.ne.s32.totalorder %s156, %s157
    %p166 = scmp.eq.s32.totalorder %s18, 0
    %p167 = por %p165, %p166
    %p168 = scmp.ne.s32.totalorder %s156, %s157
    %p169 = scmp.eq.s32.totalorder %s19, 5
    %p170 = por %p168, %p169
    %p172 = scmp.ne.s32.totalorder %s157, %s171
    %p173 = scmp.eq.s32.totalorder %s19, 0
    %p174 = por %p172, %p173
    %s175 = ssub.s32 %s20, %s32
    %s176 = ssub.s32 %s21, %s28
    %s177 = sor.u32 %s175, %s176
    %p178 = scmp.eq.s32.totalorder %s177, 0
    %s180 = sadd.s32 %s179, 1
    %s181 = scalar_select %p178, %s179, %s180
    %p184 = pneg %p178
    %p185 = scmp.eq.s32.totalorder %s13, 5
    %p186 = por %p184, %p185
    %p187 = scmp.ne.s32.totalorder %s179, %s182
    %p188 = scmp.eq.s32.totalorder %s13, 0
    %p189 = por %p187, %p188
    %p190 = scmp.ne.s32.totalorder %s179, %s182
    %p191 = scmp.eq.s32.totalorder %s18, 5
    %p192 = por %p190, %p191
    %p193 = scmp.ne.s32.totalorder %s182, %s183
    %p194 = scmp.eq.s32.totalorder %s18, 0
    %p195 = por %p193, %p194
    %p196 = scmp.ne.s32.totalorder %s182, %s183
    %p197 = scmp.eq.s32.totalorder %s19, 5
    %p198 = por %p196, %p197
    %p200 = scmp.ne.s32.totalorder %s183, %s199
    %p201 = scmp.eq.s32.totalorder %s19, 0
    %p202 = por %p200, %p201
    %p203 = scmp.le.s32.totalorder 1, %s13
    %p204 = scmp.lt.s32.totalorder %s13, 7
    %p205 = pnand %p203, %p204
    %p206 = pneg %p205
    // Predicated region
    $region9: #{tpu_custom_call.1} parent=5 // pred_check
      _
    $region10: #{tpu_custom_call.1} parent=5 // pred_check_branch
      %208 = sbr.rel (%p205) target = $region12
    $region11: #{tpu_custom_call.1} parent=5 // pred_region
      %s209 = ssub.s32 %s13, 1
      // Predicated region
      $region13: #{tpu_custom_call.1} parent=11 // pred_check
        %p210 = pneg %p104
      $region14: #{tpu_custom_call.1} parent=11 // pred_check_branch
        %212 = sbr.rel (%p210) target = $region16
      $region15: #{tpu_custom_call.1} parent=11 // pred_region
        _
      $region16: #{tpu_custom_call.1} parent=11 // pred_fallthru
        _
      // Predicated region
      $region17: #{tpu_custom_call.1} parent=11 // pred_check
        %p213 = pneg %p125
      $region18: #{tpu_custom_call.1} parent=11 // pred_check_branch
        %215 = sbr.rel (%p213) target = $region20
      $region19: #{tpu_custom_call.1} parent=11 // pred_region
        _
      $region20: #{tpu_custom_call.1} parent=11 // pred_fallthru
        _
      // Predicated region
      $region21: #{tpu_custom_call.1} parent=11 // pred_check
        %p216 = pneg %p146
      $region22: #{tpu_custom_call.1} parent=11 // pred_check_branch
        %218 = sbr.rel (%p216) target = $region24
      $region23: #{tpu_custom_call.1} parent=11 // pred_region
        _
      $region24: #{tpu_custom_call.1} parent=11 // pred_fallthru
        _
      // Predicated region
      $region25: #{tpu_custom_call.1} parent=11 // pred_check
        %p219 = pneg %p167
      $region26: #{tpu_custom_call.1} parent=11 // pred_check_branch
        %221 = sbr.rel (%p219) target = $region28
      $region27: #{tpu_custom_call.1} parent=11 // pred_region
        _
      $region28: #{tpu_custom_call.1} parent=11 // pred_fallthru
        _
    $region12: #{tpu_custom_call.1} parent=5 // pred_fallthru
      _
    %p222 = scmp.lt.s32.totalorder %s13, 6
    // Predicated region
    $region29: #{tpu_custom_call.1} parent=5 // pred_check
      %p223 = pneg %p222
    $region30: #{tpu_custom_call.1} parent=5 // pred_check_branch
      %225 = sbr.rel (%p223) target = $region32
    $region31: #{tpu_custom_call.1} parent=5 // pred_region
      // Predicated region
      $region33: #{tpu_custom_call.1} parent=31 // pred_check
        %p226 = pneg %p47
      $region34: #{tpu_custom_call.1} parent=31 // pred_check_branch
        %228 = sbr.rel (%p226) target = $region36
      $region35: #{tpu_custom_call.1} parent=31 // pred_region
        %p229 = scmp.lt.s32.totalorder %s20, 1
        %s230 = scalar_select %p229, %s20, 1
        %p231 = scmp.lt.s32.totalorder %s21, 3
        %s232 = scalar_select %p231, %s21, 3
        %s233 = smul.addr %s230, 4
        %s234 = sadd.s32 %s232, %s233
        %s235 = smul.addr %s234, 8
        %s236 = scalar_lea.vmem %s0, %s235
      $region36: #{tpu_custom_call.1} parent=31 // pred_fallthru
        _
      // Predicated region
      $region37: #{tpu_custom_call.1} parent=31 // pred_check
        %p237 = pneg %p77
      $region38: #{tpu_custom_call.1} parent=31 // pred_check_branch
        %239 = sbr.rel (%p237) target = $region40
      $region39: #{tpu_custom_call.1} parent=31 // pred_region
        %s240 = sadd.s32 %s21, 1
        %p241 = scmp.lt.s32.totalorder %s20, 1
        %s242 = scalar_select %p241, %s20, 1
        %p243 = scmp.lt.s32.totalorder %s240, 3
        %s244 = scalar_select %p243, %s240, 3
        %s245 = smul.addr %s242, 4
        %s246 = sadd.s32 %s244, %s245
        %s247 = smul.addr %s246, 8
        %s248 = scalar_lea.vmem %s1, %s247
        %s249 = sadd.s32 %s21, 1
      $region40: #{tpu_custom_call.1} parent=31 // pred_fallthru
        _
    $region32: #{tpu_custom_call.1} parent=5 // pred_fallthru
      _
    %p250 = scmp.le.s32.totalorder 1, %s13
    %p251 = scmp.lt.s32.totalorder %s13, 7
    %p252 = pnand %p250, %p251
    %p253 = pneg %p252
    // Predicated region
    $region41: #{tpu_custom_call.1} parent=5 // pred_check
      _
    $region42: #{tpu_custom_call.1} parent=5 // pred_check_branch
      %255 = sbr.rel (%p252) target = $region44
    $region43: #{tpu_custom_call.1} parent=5 // pred_region
      %s256 = ssub.s32 %s13, 1
      %p257 = scmp.lt.s32.totalorder %s22, 1
      %s258 = scalar_select %p257, %s22, 1
      %p259 = scmp.lt.s32.totalorder %s23, 3
      %s260 = scalar_select %p259, %s23, 3
      %s261 = smul.addr %s258, 4
      %s262 = sadd.s32 %s260, %s261
      %s263 = smul.addr %s262, 8
      %s264 = scalar_lea.vmem %s0, %s263
      %p265 = pneg %p53
      %p266 = pneg %p50
      %s267 = sadd.s32 %s23, 1
      %p268 = scmp.lt.s32.totalorder %s22, 1
      %s269 = scalar_select %p268, %s22, 1
      %p270 = scmp.lt.s32.totalorder %s267, 3
      %s271 = scalar_select %p270, %s267, 3
      %s272 = smul.addr %s269, 4
      %s273 = sadd.s32 %s271, %s272
      %s274 = smul.addr %s273, 8
      %s275 = scalar_lea.vmem %s1, %s274
      %p276 = pneg %p83
      %p277 = pneg %p80
      %p278 = pneg %p104
      %p279 = pneg %p101
      %p280 = pneg %p125
      %p281 = pneg %p122
      %p282 = pneg %p146
      %p283 = pneg %p143
      %p284 = pneg %p167
      %p285 = pneg %p164
      %p286 = pneg %p195
      %p287 = pneg %p192
      %p288 = scmp.lt.s32.totalorder %s22, 1
      %s289 = scalar_select %p288, %s22, 1
      %p290 = scmp.lt.s32.totalorder %s23, 2
      %s291 = scalar_select %p290, %s23, 2
      %s292 = smul.addr %s289, 3
      %s293 = sadd.s32 %s291, %s292
      %s294 = smul.addr %s293, 8
      %s295 = scalar_lea.vmem %s6, %s294
      %p296 = scmp.lt.s32.totalorder %s22, 1
      %s297 = scalar_select %p296, %s22, 1
      %p298 = scmp.lt.s32.totalorder %s23, 3
      %s299 = scalar_select %p298, %s23, 3
      %s300 = smul.addr %s297, 4
      %s301 = sadd.s32 %s299, %s300
      %s302 = smul.addr %s301, 8
      %s303 = scalar_lea.vmem %s0, %s302
      %s304 = sadd.s32 %s23, 1
      %p305 = scmp.lt.s32.totalorder %s22, 1
      %s306 = scalar_select %p305, %s22, 1
      %p307 = scmp.lt.s32.totalorder %s304, 3
      %s308 = scalar_select %p307, %s304, 3
      %s309 = smul.addr %s306, 4
      %s310 = sadd.s32 %s308, %s309
      %s311 = smul.addr %s310, 8
      %s312 = scalar_lea.vmem %s1, %s311
      %s313 = sadd.s32 %s23, 1
      %p314 = scmp.lt.s32.totalorder %s22, 1
      %s315 = scalar_select %p314, %s22, 1
      %p316 = scmp.lt.s32.totalorder %s23, 2
      %s317 = scalar_select %p316, %s23, 2
      %s318 = smul.addr %s315, 3
      %s319 = sadd.s32 %s317, %s318
      %s320 = smul.addr %s319, 8
      %s321 = scalar_lea.vmem %s6, %s320
      %v322 = vld [vmem:[%s303] sm:$0xff]
      %vm323 = vcmask 31744
      %324 = vst.msk [vmem:[#allocation2] sm:$0xff] %vm323, %v322
      %v325 = vld [vmem:[%s312] sm:$0xff]
      %326 = vst.msk [vmem:[#allocation2 + $0x8] sm:$0xff] %vm323, %v325
      %v327 = vld [vmem:[#allocation2] sm:$0xff]
      %v328 = vld [vmem:[#allocation2 + $0x8] sm:$0x7]
      %v329 = vld [vmem:[%s2] sm:$0xf]
      %v330 = vld [vmem:[#allocation2 + $0x1] sm:$0xff]
      %v331 = vld [vmem:[#allocation2 + $0x9] sm:$0x7]
      %v332 = vld [vmem:[%s2 + $0x4] sm:$0xf]
      %v334 = vsel %vm323, %v330, 0
      %v337 = vsel %vm323, %v331, 0
      %vm339 = vcmask 1043456
      %v341 = vsel %vm339, %v332, 0
      %343 = vmatpush.msra.mxu0 0.0
      %344 = vmatpush.msra.mxu0 0.0
      %345 = vmatpush.msra.mxu0 0.0
      %346 = vmatpush.msra.mxu0 0.0
      %347 = vmatpush.msra.mxu0 0.0
      %348 = vmatpush.msra.mxu0 0.0
      %349 = vmatpush.msra.mxu0 0.0
      %350 = vmatpush.msra.mxu0 0.0
      %351 = vmatpush.msra.mxu0 0.0
      %352 = vmatpush.msra.mxu0 0.0
      %353 = vmatpush.msra.mxu0 0.0
      %354 = vmatpush.msra.mxu0 0.0
      %355 = vmatpush.msra.mxu0 0.0
      %356 = vmatpush.msra.mxu0 0.0
      %357 = vmatpush.msra.mxu0 0.0
      %358 = vmatpush.msra.mxu0 %v341
      %359 = vmatmul.f32.gmra.mxu0 %v334
      %v360 = vpop.f32.mrf.mxu0
      %v361 = vadd.f32 0.0, %v360
      %362 = vmatmul.f32.gmra.mxu0 %v337
      %v363 = vpop.f32.mrf.mxu0
      %v364 = vadd.f32 0.0, %v363
      %365 = vdwg.mxu0
      %v367 = vsel %vm323, %v327, 0
      %v370 = vsel %vm323, %v328, 0
      %v373 = vsel %vm339, %v329, 0
      %375 = vmatpush.msra.mxu0 0.0
      %376 = vmatpush.msra.mxu0 0.0
      %377 = vmatpush.msra.mxu0 0.0
      %378 = vmatpush.msra.mxu0 0.0
      %379 = vmatpush.msra.mxu0 0.0
      %380 = vmatpush.msra.mxu0 0.0
      %381 = vmatpush.msra.mxu0 0.0
      %382 = vmatpush.msra.mxu0 0.0
      %383 = vmatpush.msra.mxu0 0.0
      %384 = vmatpush.msra.mxu0 0.0
      %385 = vmatpush.msra.mxu0 0.0
      %386 = vmatpush.msra.mxu0 0.0
      %387 = vmatpush.msra.mxu0 0.0
      %388 = vmatpush.msra.mxu0 0.0
      %389 = vmatpush.msra.mxu0 0.0
      %390 = vmatpush.msra.mxu0 %v373
      %391 = vmatmul.f32.gmra.mxu0 %v367
      %v392 = vpop.f32.mrf.mxu0
      %v393 = vadd.f32 %v361, %v392
      %394 = vmatmul.f32.gmra.mxu0 %v370
      %v395 = vpop.f32.mrf.mxu0
      %v396 = vadd.f32 %v364, %v395
      %397 = vdwg.mxu0
      %v398 = vld [vmem:[#allocation2 + $0x2] sm:$0xff]
      %v399 = vld [vmem:[#allocation2 + $0xa] sm:$0x7]
      %v400 = vld [vmem:[%s2 + $0x8] sm:$0xf]
      %v402 = vsel %vm323, %v398, 0
      %v405 = vsel %vm323, %v399, 0
      %v408 = vsel %vm339, %v400, 0
      %410 = vmatpush.msra.mxu0 0.0
      %411 = vmatpush.msra.mxu0 0.0
      %412 = vmatpush.msra.mxu0 0.0
      %413 = vmatpush.msra.mxu0 0.0
      %414 = vmatpush.msra.mxu0 0.0
      %415 = vmatpush.msra.mxu0 0.0
      %416 = vmatpush.msra.mxu0 0.0
      %417 = vmatpush.msra.mxu0 0.0
      %418 = vmatpush.msra.mxu0 0.0
      %419 = vmatpush.msra.mxu0 0.0
      %420 = vmatpush.msra.mxu0 0.0
      %421 = vmatpush.msra.mxu0 0.0
      %422 = vmatpush.msra.mxu0 0.0
      %423 = vmatpush.msra.mxu0 0.0
      %424 = vmatpush.msra.mxu0 0.0
      %425 = vmatpush.msra.mxu0 %v408
      %426 = vmatmul.f32.gmra.mxu0 %v402
      %v427 = vpop.f32.mrf.mxu0
      %v428 = vadd.f32 0.0, %v427
      %429 = vmatmul.f32.gmra.mxu0 %v405
      %v430 = vpop.f32.mrf.mxu0
      %v431 = vadd.f32 0.0, %v430
      %432 = vdwg.mxu0
      %v433 = vadd.f32 %v393, %v428
      %v434 = vadd.f32 %v396, %v431
      %v435 = vld [vmem:[#allocation2 + $0x3] sm:$0xff]
      %v436 = vld [vmem:[#allocation2 + $0xb] sm:$0x7]
      %v437 = vld [vmem:[%s2 + $0xc] sm:$0xf]
      %v439 = vsel %vm323, %v435, 0
      %v442 = vsel %vm323, %v436, 0
      %v445 = vsel %vm339, %v437, 0
      %447 = vmatpush.msra.mxu0 0.0
      %448 = vmatpush.msra.mxu0 0.0
      %449 = vmatpush.msra.mxu0 0.0
      %450 = vmatpush.msra.mxu0 0.0
      %451 = vmatpush.msra.mxu0 0.0
      %452 = vmatpush.msra.mxu0 0.0
      %453 = vmatpush.msra.mxu0 0.0
      %454 = vmatpush.msra.mxu0 0.0
      %455 = vmatpush.msra.mxu0 0.0
      %456 = vmatpush.msra.mxu0 0.0
      %457 = vmatpush.msra.mxu0 0.0
      %458 = vmatpush.msra.mxu0 0.0
      %459 = vmatpush.msra.mxu0 0.0
      %460 = vmatpush.msra.mxu0 0.0
      %461 = vmatpush.msra.mxu0 0.0
      %462 = vmatpush.msra.mxu0 %v445
      %463 = vmatmul.f32.gmra.mxu0 %v439
      %v464 = vpop.f32.mrf.mxu0
      %v465 = vadd.f32 0.0, %v464
      %466 = vmatmul.f32.gmra.mxu0 %v442
      %v467 = vpop.f32.mrf.mxu0
      %v468 = vadd.f32 0.0, %v467
      %469 = vdwg.mxu0
      %v470 = vadd.f32 %v433, %v465
      %v471 = vadd.f32 %v434, %v468
      %v472 = vld [vmem:[%s3] sm:$0x1]
      %v474 = vperm.slane %v472, 0
      %v476 = vadd.f32 %v470, %v474
      %v477 = vadd.f32 %v471, %v474
      %v478 = vtanh.pop %v476
      %v479 = vtanh.pop %v477
      %v480 = vlaneseq
      %v481 = vshrl.u32 %v480, 7
      %v482 = vadd.s32 %v481, 8
      %s483 = smul.u32 %s23, 8
      %v484 = vstv %s483
      %v485 = vadd.s32 %v484, %v481
      %v486 = vadd.s32 %v484, %v482
      %v487 = vsub.s32 %v485, 3
      %v488 = vsub.s32 %v486, 3
      %vm489 = vcmp.ge.s32.totalorder %v487, 0
      %vm490 = vcmp.ge.s32.totalorder %v488, 0
      %vm491 = vcmp.lt.s32.totalorder %v487, 17
      %vm492 = vcmp.lt.s32.totalorder %v488, 17
      %vm493 = vmand %vm489, %vm491
      %vm494 = vmand %vm490, %vm492
      %v495 = vsel %vm493, 1, 0
      %v496 = vsel %vm494, 1, 0
      %vm497 = vcmp.eq.s32.totalorder %v495, 1
      %vm498 = vcmp.eq.s32.totalorder %v496, 1
      %v499 = vsel %vm497, %v478, 0.0
      %v500 = vsel %vm498, %v479, 0.0
      %v501 = vld [vmem:[%s4] sm:$0xff]
      %vm504 = vcmask 1045504
      %v505 = vrot.slane %v499, 2
      %v506 = vrot.slane %v500, 2
      %v507 = vsel %vm504, %v505, %v506
      %509 = vrot.lane.b32.xlu0 %v501, 124
      %v510 = vpop.permute.xlu0 %509
      %vm512 = vcmask 64512
      %v513 = vsel %vm512, %v507, 0
      %515 = vmatpush.msra.mxu0 0.0
      %516 = vmatpush.msra.mxu0 0.0
      %517 = vmatpush.msra.mxu0 0.0
      %518 = vmatpush.msra.mxu0 0.0
      %519 = vmatpush.msra.mxu0 0.0
      %520 = vmatpush.msra.mxu0 0.0
      %521 = vmatpush.msra.mxu0 0.0
      %522 = vmatpush.msra.mxu0 0.0
      %523 = vmatpush.msra.mxu0 0.0
      %524 = vmatpush.msra.mxu0 0.0
      %525 = vmatpush.msra.mxu0 0.0
      %526 = vmatpush.msra.mxu0 0.0
      %527 = vmatpush.msra.mxu0 0.0
      %528 = vmatpush.msra.mxu0 0.0
      %529 = vmatpush.msra.mxu0 0.0
      %530 = vmatpush.msra.mxu0 %v510
      %531 = vmatmul.f32.gmra.mxu0 %v513
      %v532 = vpop.f32.mrf.mxu0
      %v533 = vadd.f32 0.0, %v532
      %534 = vdwg.mxu0
      %vm535 = vcmask 1044480
      %v536 = vrot.slane %v499, 3
      %v537 = vrot.slane %v500, 3
      %v538 = vsel %vm535, %v536, %v537
      %v539 = vsel %vm512, %v538, 0
      %541 = vmatpush.msra.mxu0 0.0
      %542 = vmatpush.msra.mxu0 0.0
      %543 = vmatpush.msra.mxu0 0.0
      %544 = vmatpush.msra.mxu0 0.0
      %545 = vmatpush.msra.mxu0 0.0
      %546 = vmatpush.msra.mxu0 0.0
      %547 = vmatpush.msra.mxu0 0.0
      %548 = vmatpush.msra.mxu0 0.0
      %549 = vmatpush.msra.mxu0 0.0
      %550 = vmatpush.msra.mxu0 0.0
      %551 = vmatpush.msra.mxu0 0.0
      %552 = vmatpush.msra.mxu0 0.0
      %553 = vmatpush.msra.mxu0 0.0
      %554 = vmatpush.msra.mxu0 0.0
      %555 = vmatpush.msra.mxu0 0.0
      %556 = vmatpush.msra.mxu0 %v501
      %557 = vmatmul.f32.gmra.mxu0 %v539
      %v558 = vpop.f32.mrf.mxu0
      %v559 = vadd.f32 %v533, %v558
      %560 = vdwg.mxu0
      %vm561 = vcmask 1046528
      %v562 = vrot.slane %v499, 1
      %v563 = vrot.slane %v500, 1
      %v564 = vsel %vm561, %v562, %v563
      %565 = vrot.lane.b32.xlu0 %v501, 120
      %v566 = vpop.permute.xlu0 %565
      %v568 = vsel %vm512, %v564, 0
      %570 = vmatpush.msra.mxu0 0.0
      %571 = vmatpush.msra.mxu0 0.0
      %572 = vmatpush.msra.mxu0 0.0
      %573 = vmatpush.msra.mxu0 0.0
      %574 = vmatpush.msra.mxu0 0.0
      %575 = vmatpush.msra.mxu0 0.0
      %576 = vmatpush.msra.mxu0 0.0
      %577 = vmatpush.msra.mxu0 0.0
      %578 = vmatpush.msra.mxu0 0.0
      %579 = vmatpush.msra.mxu0 0.0
      %580 = vmatpush.msra.mxu0 0.0
      %581 = vmatpush.msra.mxu0 0.0
      %582 = vmatpush.msra.mxu0 0.0
      %583 = vmatpush.msra.mxu0 0.0
      %584 = vmatpush.msra.mxu0 0.0
      %585 = vmatpush.msra.mxu0 %v566
      %586 = vmatmul.f32.gmra.mxu0 %v568
      %v587 = vpop.f32.mrf.mxu0
      %v588 = vadd.f32 0.0, %v587
      %589 = vdwg.mxu0
      %v590 = vadd.f32 %v559, %v588
      %591 = vrot.lane.b32.xlu0 %v501, 116
      %v592 = vpop.permute.xlu0 %591
      %v594 = vsel %vm512, %v499, 0
      %596 = vmatpush.msra.mxu0 0.0
      %597 = vmatpush.msra.mxu0 0.0
      %598 = vmatpush.msra.mxu0 0.0
      %599 = vmatpush.msra.mxu0 0.0
      %600 = vmatpush.msra.mxu0 0.0
      %601 = vmatpush.msra.mxu0 0.0
      %602 = vmatpush.msra.mxu0 0.0
      %603 = vmatpush.msra.mxu0 0.0
      %604 = vmatpush.msra.mxu0 0.0
      %605 = vmatpush.msra.mxu0 0.0
      %606 = vmatpush.msra.mxu0 0.0
      %607 = vmatpush.msra.mxu0 0.0
      %608 = vmatpush.msra.mxu0 0.0
      %609 = vmatpush.msra.mxu0 0.0
      %610 = vmatpush.msra.mxu0 0.0
      %611 = vmatpush.msra.mxu0 %v592
      %612 = vmatmul.f32.gmra.mxu0 %v594
      %v613 = vpop.f32.mrf.mxu0
      %v614 = vadd.f32 0.0, %v613
      %615 = vdwg.mxu0
      %v616 = vadd.f32 %v590, %v614
      %s617 = sld [smem:[#allocation3]]
      %v618 = vstv %s617
      %v619 = vadd.f32 %v616, %v618
      %620 = vst.msk [vmem:[%s321] sm:$0xff] %vm323, %v619
      %p621 = scmp.lt.s32.totalorder %s22, 1
      %s622 = scalar_select %p621, %s22, 1
      %p623 = scmp.lt.s32.totalorder %s23, 2
      %s624 = scalar_select %p623, %s23, 2
      %s625 = smul.addr %s622, 3
      %s626 = sadd.s32 %s624, %s625
      %s627 = smul.addr %s626, 8
      %s628 = scalar_lea.vmem %s6, %s627
      // Predicated region
      $region45: #{tpu_custom_call.1} parent=43 // pred_check
        %p629 = pneg %p192
      $region46: #{tpu_custom_call.1} parent=43 // pred_check_branch
        %631 = sbr.rel (%p629) target = $region48
      $region47: #{tpu_custom_call.1} parent=43 // pred_region
        _
      $region48: #{tpu_custom_call.1} parent=43 // pred_fallthru
        _
    $region44: #{tpu_custom_call.1} parent=5 // pred_fallthru
      _
    %p632 = scmp.le.s32.totalorder 2, %s13
    // Predicated region
    $region49: #{tpu_custom_call.1} parent=5 // pred_check
      %p633 = pneg %p632
    $region50: #{tpu_custom_call.1} parent=5 // pred_check_branch
      %635 = sbr.rel (%p633) target = $region52
    $region51: #{tpu_custom_call.1} parent=5 // pred_region
      %s636 = ssub.s32 %s13, 2
      // Predicated region
      $region53: #{tpu_custom_call.1} parent=51 // pred_check
        %p637 = pneg %p198
      $region54: #{tpu_custom_call.1} parent=51 // pred_check_branch
        %639 = sbr.rel (%p637) target = $region56
      $region55: #{tpu_custom_call.1} parent=51 // pred_region
        %p640 = scmp.lt.s32.totalorder %s24, 1
        %s641 = scalar_select %p640, %s24, 1
        %p642 = scmp.lt.s32.totalorder %s25, 2
        %s643 = scalar_select %p642, %s25, 2
        %s644 = smul.addr %s641, 3
        %s645 = sadd.s32 %s643, %s644
        %s646 = smul.addr %s645, 8
        %s647 = scalar_lea.vmem %s6, %s646
      $region56: #{tpu_custom_call.1} parent=51 // pred_fallthru
        _
    $region52: #{tpu_custom_call.1} parent=5 // pred_fallthru
      _
  $region6: #{tpu_custom_call.1} parent=0 // loop_footer
    %s17 = sadd.s32 1, %s13
  $region7: #{tpu_custom_call.1} parent=0 // loop_footer_branch
    %12 = sbr.rel target = $region3
  $region8: #{tpu_custom_call.1} parent=0 // loop_exit
    _

</llo_original>
